<compile_context>
chip_gen: v7x
topology: tpu7x:2x2x1
jax: 0.10.0
libtpu: 0.0.40
codegen_flags: <defaults>
</compile_context>

<pallas_src>
import jax
import jax.numpy as jnp
from jax import lax
from jax.experimental import pallas as pl
from jax.experimental.pallas import tpu as pltpu

N_REPEAT = 5            # the (x1, x2) pair appears 5 times along dim=1
N_CH = 2 * N_REPEAT     # 10 output channels


# ----------------------------- kernels -----------------------------

def _flat_kernel(x1_ref, x2_ref, o_ref):
    """x1_ref, x2_ref: (TB, HW); o_ref: (TB, 10*HW) lane-flat output.

    Even channels = tanh(x1) + x1*x2, odd channels = tanh(x2) + x1*x2.
    Each channel slab is a dense, lane-aligned (TB, HW) store (HW % 128 == 0),
    so the per-output-vreg cost is just the vst itself.
    """
    a = x1_ref[...].astype(jnp.float32)
    b = x2_ref[...].astype(jnp.float32)
    prod = a * b
    ta = (jnp.tanh(a) + prod).astype(o_ref.dtype)   # cast once (2x input size)
    tb = (jnp.tanh(b) + prod).astype(o_ref.dtype)
    hw = a.shape[-1]
    for c in range(N_CH):                           # 10 unmasked dense stores
        src = ta if (c % 2 == 0) else tb
        o_ref[:, c * hw:(c + 1) * hw] = src


def _tiled_kernel(x1_ref, x2_ref, o_ref):
    """Fallback path. x1_ref, x2_ref: (TB, THW); o_ref: (TB, 10, THW)."""
    a = x1_ref[...].astype(jnp.float32)
    b = x2_ref[...].astype(jnp.float32)
    prod = a * b
    ta = jnp.tanh(a) + prod
    tb = jnp.tanh(b) + prod
    tb_sz, thw = a.shape
    ch = lax.broadcasted_iota(jnp.int32, (tb_sz, N_CH, thw), 1)
    out = jnp.where((ch % 2) == 0, ta[:, None, :], tb[:, None, :])
    o_ref[...] = out.astype(o_ref.dtype)            # one full-tile store


# ------------------------- tiling helpers --------------------------

def _vmem_limit_bytes():
    cap = None
    try:
        cap = getattr(pltpu.get_tpu_info(), "vmem_capacity_bytes", None)
    except Exception:
        cap = None
    if not cap:
        cap = 64 * 1024 * 1024       # conservative default: v7x physical per TC
    # HBM-bound kernel: 48 MiB of scoped VMEM is plenty to hide DMA latency;
    # stays below v7x's 64 MiB physical and well below v5e/v6e's 128 MiB.
    return int(min(48 * 1024 * 1024, (cap * 3) // 4))


def _valid_batch_tiles(batch):
    # Multiples of 8 dividing B (satisfies the (8,128) block rule), plus B
    # itself (block dim == full array dim is always layout-legal).
    cands = {t for t in (1024, 512, 256, 128, 64, 32, 16, 8) if batch % t == 0}
    cands.add(batch)
    return sorted(cands, reverse=True)


def _pick_batch_tile(fits, batch):
    """fits: descending list of legal tiles whose working set fits VMEM.
    Prefer the largest tile that still yields >=4 (then >=2) grid steps so the
    software pipeline runs and both v7x TensorCores get work."""
    for min_steps in (4, 2):
        for t in fits:
            if batch // t >= min_steps:
                return t
    return fits[0]


# ----------------------------- forward -----------------------------

def model_forward(x, x1, x2):
    del x  # unused, mirrors the PyTorch forward
    B, C, H, W = x1.shape
    assert C == 1, "x1/x2 need channel dim 1 for the `+ x1 * x2` broadcast"
    assert x2.shape == x1.shape
    hw = H * W
    out_dtype = jnp.promote_types(x1.dtype, x2.dtype)

    x1f = x1.reshape(B, hw)
    x2f = x2.reshape(B, hw)

    in_bytes = jnp.dtype(x1.dtype).itemsize + jnp.dtype(x2.dtype).itemsize
    out_bytes = jnp.dtype(out_dtype).itemsize

    vmem_limit = _vmem_limit_bytes()
    work_budget = vmem_limit - 8 * 1024 * 1024      # headroom for compiler scratch

    tiles = _valid_batch_tiles(B)

    def flat_step_bytes(t):
        # double-buffered: 2 input blocks + 1 lane-flat output block, 2 buffers each
        return 2 * (t * hw * in_bytes + t * N_CH * hw * out_bytes)

    flat_fits = [t for t in tiles if flat_step_bytes(t) <= work_budget]

    if hw % 128 == 0 and flat_fits:
        # ---- primary path: lane-flat (B, 10*HW) output, batch-tiled grid ----
        tb = _pick_batch_tile(flat_fits, B)
        out_flat = pl.pallas_call(
            _flat_kernel,
            out_shape=jax.ShapeDtypeStruct((B, N_CH * hw), out_dtype),
            grid=(B // tb,),
            in_specs=[
                pl.BlockSpec((tb, hw), lambda i: (i, 0)),
                pl.BlockSpec((tb, hw), lambda i: (i, 0)),
            ],
            out_specs=pl.BlockSpec((tb, N_CH * hw), lambda i: (i, 0)),
            compiler_params=pltpu.CompilerParams(
                dimension_semantics=("parallel",),
                vmem_limit_bytes=vmem_limit,
            ),
        )(x1f, x2f)
        # (B, 10*HW) -> (B, 10, H, W): layout-preserving (free) reshape.
        return out_flat.reshape(B, N_CH, H, W)

    # ---- fallback path: (B, 10, HW) output with an HW (lane) grid axis ----
    tb = min(tiles)   # smallest legal batch tile -> maximum room for lane tiling
    # bytes per lane of the double-buffered working set at this tb
    # (10 channels pad to 16 sublanes per batch row in a (tb, 10, thw) block)
    per_lane = 2 * (tb * in_bytes + tb * 16 * out_bytes)
    if per_lane * hw <= work_budget:
        thw = hw
    else:
        t_fit = max(128, (work_budget // per_lane) // 128 * 128)
        thw = t_fit
        cand = t_fit
        for _ in range(64):   # bounded search for a divisor of hw (no partial block)
            if cand >= 128 and hw % cand == 0:
                thw = cand
                break
            cand -= 128

    out = pl.pallas_call(
        _tiled_kernel,
        out_shape=jax.ShapeDtypeStruct((B, N_CH, hw), out_dtype),
        grid=(B // tb, pl.cdiv(hw, thw)),
        in_specs=[
            pl.BlockSpec((tb, thw), lambda i, j: (i, j)),
            pl.BlockSpec((tb, thw), lambda i, j: (i, j)),
        ],
        out_specs=pl.BlockSpec((tb, N_CH, thw), lambda i, j: (i, 0, j)),
        compiler_params=pltpu.CompilerParams(
            dimension_semantics=("parallel", "parallel"),
            vmem_limit_bytes=vmem_limit,
        ),
    )(x1f, x2f)
    return out.reshape(B, N_CH, H, W)


def _reference(x, x1, x2):
    v1 = jnp.concatenate((x1, x2), axis=1)
    v2 = jnp.concatenate((v1, x1, x2, x1, x2, x1, x2, x1, x2), axis=1)
    return jnp.tanh(v2) + x1 * x2


if __name__ == "__main__":
    key = jax.random.PRNGKey(0)
    k0, k1, k2 = jax.random.split(key, 3)
    B, H, W = 2, 16, 16
    x = jax.random.normal(k0, (B, 4, H, W), dtype=jnp.float32)   # unused by forward
    x1 = jax.random.normal(k1, (B, 1, H, W), dtype=jnp.float32)
    x2 = jax.random.normal(k2, (B, 1, H, W), dtype=jnp.float32)

    y = model_forward(x, x1, x2)
    jax.block_until_ready(y)

    y_ref = _reference(x, x1, x2)
    assert y.shape == (B, 10, H, W), y.shape
    assert jnp.allclose(y, y_ref, atol=1e-5, rtol=1e-5), "mismatch vs reference"
    print("KERNEL_OK")
</pallas_src>

<mosaic_0001>
module attributes {stable_mosaic.version = 11 : i64} {
  func.func @_flat_kernel(%arg0: i32, %arg1: memref<2x256xf32, #tpu.memory_space<vmem>>, %arg2: memref<2x256xf32, #tpu.memory_space<vmem>>, %arg3: memref<2x2560xf32, #tpu.memory_space<vmem>>) attributes {dimension_semantics = [#tpu.dimension_semantics<parallel>], iteration_bounds = array<i64: 1>, scalar_prefetch = 0 : i64, scratch_operands = 0 : i64, tpu.core_type = #tpu.core_type<tc>, window_params = [{transform_indices = @transform_0, window_bounds = array<i64: 2, 256>}, {transform_indices = @transform_1, window_bounds = array<i64: 2, 256>}, {transform_indices = @transform_2, window_bounds = array<i64: 2, 2560>}]} {
    %c0 = arith.constant 0 : index
    %c0_0 = arith.constant 0 : index
    %0 = vector.load %arg1[%c0, %c0_0] : memref<2x256xf32, #tpu.memory_space<vmem>>, vector<2x256xf32>
    %c0_1 = arith.constant 0 : index
    %c0_2 = arith.constant 0 : index
    %1 = vector.load %arg2[%c0_1, %c0_2] : memref<2x256xf32, #tpu.memory_space<vmem>>, vector<2x256xf32>
    %2 = arith.mulf %0, %1 : vector<2x256xf32>
    %3 = math.tanh %0 : vector<2x256xf32>
    %4 = arith.addf %3, %2 : vector<2x256xf32>
    %5 = math.tanh %1 : vector<2x256xf32>
    %6 = arith.addf %5, %2 : vector<2x256xf32>
    %c0_3 = arith.constant 0 : index
    %c0_4 = arith.constant 0 : index
    %7 = vector.load %arg3[%c0_3, %c0_4] : memref<2x2560xf32, #tpu.memory_space<vmem>>, vector<2x256xf32>
    tpu.vector_store %arg3[%c0_3, %c0_4], %4 {strides = array<i32>} : memref<2x2560xf32, #tpu.memory_space<vmem>>, vector<2x256xf32>,
    %c0_5 = arith.constant 0 : index
    %c256 = arith.constant 256 : index
    %8 = vector.load %arg3[%c0_5, %c256] : memref<2x2560xf32, #tpu.memory_space<vmem>>, vector<2x256xf32>
    tpu.vector_store %arg3[%c0_5, %c256], %6 {strides = array<i32>} : memref<2x2560xf32, #tpu.memory_space<vmem>>, vector<2x256xf32>,
    %c0_6 = arith.constant 0 : index
    %c512 = arith.constant 512 : index
    %9 = vector.load %arg3[%c0_6, %c512] : memref<2x2560xf32, #tpu.memory_space<vmem>>, vector<2x256xf32>
    tpu.vector_store %arg3[%c0_6, %c512], %4 {strides = array<i32>} : memref<2x2560xf32, #tpu.memory_space<vmem>>, vector<2x256xf32>,
    %c0_7 = arith.constant 0 : index
    %c768 = arith.constant 768 : index
    %10 = vector.load %arg3[%c0_7, %c768] : memref<2x2560xf32, #tpu.memory_space<vmem>>, vector<2x256xf32>
    tpu.vector_store %arg3[%c0_7, %c768], %6 {strides = array<i32>} : memref<2x2560xf32, #tpu.memory_space<vmem>>, vector<2x256xf32>,
    %c0_8 = arith.constant 0 : index
    %c1024 = arith.constant 1024 : index
    %11 = vector.load %arg3[%c0_8, %c1024] : memref<2x2560xf32, #tpu.memory_space<vmem>>, vector<2x256xf32>
    tpu.vector_store %arg3[%c0_8, %c1024], %4 {strides = array<i32>} : memref<2x2560xf32, #tpu.memory_space<vmem>>, vector<2x256xf32>,
    %c0_9 = arith.constant 0 : index
    %c1280 = arith.constant 1280 : index
    %12 = vector.load %arg3[%c0_9, %c1280] : memref<2x2560xf32, #tpu.memory_space<vmem>>, vector<2x256xf32>
    tpu.vector_store %arg3[%c0_9, %c1280], %6 {strides = array<i32>} : memref<2x2560xf32, #tpu.memory_space<vmem>>, vector<2x256xf32>,
    %c0_10 = arith.constant 0 : index
    %c1536 = arith.constant 1536 : index
    %13 = vector.load %arg3[%c0_10, %c1536] : memref<2x2560xf32, #tpu.memory_space<vmem>>, vector<2x256xf32>
    tpu.vector_store %arg3[%c0_10, %c1536], %4 {strides = array<i32>} : memref<2x2560xf32, #tpu.memory_space<vmem>>, vector<2x256xf32>,
    %c0_11 = arith.constant 0 : index
    %c1792 = arith.constant 1792 : index
    %14 = vector.load %arg3[%c0_11, %c1792] : memref<2x2560xf32, #tpu.memory_space<vmem>>, vector<2x256xf32>
    tpu.vector_store %arg3[%c0_11, %c1792], %6 {strides = array<i32>} : memref<2x2560xf32, #tpu.memory_space<vmem>>, vector<2x256xf32>,
    %c0_12 = arith.constant 0 : index
    %c2048 = arith.constant 2048 : index
    %15 = vector.load %arg3[%c0_12, %c2048] : memref<2x2560xf32, #tpu.memory_space<vmem>>, vector<2x256xf32>
    tpu.vector_store %arg3[%c0_12, %c2048], %4 {strides = array<i32>} : memref<2x2560xf32, #tpu.memory_space<vmem>>, vector<2x256xf32>,
    %c0_13 = arith.constant 0 : index
    %c2304 = arith.constant 2304 : index
    %16 = vector.load %arg3[%c0_13, %c2304] : memref<2x2560xf32, #tpu.memory_space<vmem>>, vector<2x256xf32>
    tpu.vector_store %arg3[%c0_13, %c2304], %6 {strides = array<i32>} : memref<2x2560xf32, #tpu.memory_space<vmem>>, vector<2x256xf32>,
    return
  }
  func.func @transform_0(%arg0: i32) -> (i32, i32) {
    %c0_i32 = arith.constant 0 : i32
    %c0_i32_0 = arith.constant 0 : i32
    return %arg0, %c0_i32 : i32, i32
  }
  func.func @transform_1(%arg0: i32) -> (i32, i32) {
    %c0_i32 = arith.constant 0 : i32
    %c0_i32_0 = arith.constant 0 : i32
    return %arg0, %c0_i32 : i32, i32
  }
  func.func @transform_2(%arg0: i32) -> (i32, i32) {
    %c0_i32 = arith.constant 0 : i32
    %c0_i32_0 = arith.constant 0 : i32
    return %arg0, %c0_i32 : i32, i32
  }
}

</mosaic_0001>

<llo_original>
// kernel: tpu_custom_call.1
$region0: #{tpu_custom_call.1}
  #allocation0 [shape = 'u32[]', space=smem, size = 0x4, offset = 0x4, fixed_abs, tag = 'smem constant byte address 0x4 - core index']
  #allocation1 [shape = 'u32[144,128]{1,0:T(1,128)}', space=vmem, size = 0x12000, scoped, tag = 'internal scratch']
  %s0 = inlined_call_operand.hbm [shape: f32[2,256], index: 0, kind: input, shape index: {}]
  %s1 = inlined_call_operand.hbm [shape: f32[2,256], index: 1, kind: input, shape index: {}]
  %s2 = inlined_call_operand.hbm [shape: f32[2,2560], index: 2, kind: output, shape index: {}]
  %s3 = sld [smem:[#allocation0]]
  $region26: #{tpu_custom_call.1} parent=0
    _
  %s5 = ssub.s32 1, %s3
  %s6 = scalar_select 0, %s5, %s3
  $region1: #{tpu_custom_call.1} parent=0
    #allocation2 [shape = 'u8[2048]{0}', space=vmem, size = 0x800, scoped, tag = 'input window, operand 0, single buffered']
    #allocation3 [shape = 's32[1]{0}', space=sflag, size = 0x4, scoped, tag = 'scoped memory for tpu_custom_call.1']
    #allocation4 [shape = 's32[1]{0}', space=sflag, size = 0x4, scoped, tag = 'scoped memory for tpu_custom_call.1']
    #allocation5 [shape = 'u8[2048]{0}', space=vmem, size = 0x800, scoped, tag = 'input window, operand 1, single buffered']
    #allocation6 [shape = 's32[1]{0}', space=sflag, size = 0x4, scoped, tag = 'scoped memory for tpu_custom_call.1']
    #allocation7 [shape = 'u8[20480]{0}', space=vmem, size = 0x5000, scoped, tag = 'output window, operand 0, single buffered']
    %7 = vsyncpa [#allocation3], 0
    %8 = vsyncpa [#allocation6], 0
    %9 = vsyncpa [#allocation4], 0
    // Predicated region
    $region2: #{tpu_custom_call.1} parent=1 // pred_check
      _
    $region3: #{tpu_custom_call.1} parent=1 // pred_check_branch
      %11 = sbr.rel (0) target = $region5
    $region4: #{tpu_custom_call.1} parent=1 // pred_region
      %s13 = ssub.s32 64, 64
      %14 = vsyncadd [#allocation3], %s13
      %s16 = sshll.u32 [#allocation2], 4
      %s17 = int_to_ptr.vmem [resolvable:$true] %s16
      %19 = dma.hbm_to_vmem [thread:$0]  %s0, 64, %s17, [#allocation3]
    $region5: #{tpu_custom_call.1} parent=1 // pred_fallthru
      _
    // Predicated region
    $region6: #{tpu_custom_call.1} parent=1 // pred_check
      _
    $region7: #{tpu_custom_call.1} parent=1 // pred_check_branch
      %21 = sbr.rel (0) target = $region9
    $region8: #{tpu_custom_call.1} parent=1 // pred_region
      %s23 = ssub.s32 64, 64
      %24 = vsyncadd [#allocation6], %s23
      %s26 = sshll.u32 [#allocation5], 4
      %s27 = int_to_ptr.vmem [resolvable:$true] %s26
      %29 = dma.hbm_to_vmem [thread:$0]  %s1, 64, %s27, [#allocation6]
    $region9: #{tpu_custom_call.1} parent=1 // pred_fallthru
      _
    // Predicated region
    $region10: #{tpu_custom_call.1} parent=1 // pred_check
      _
    $region11: #{tpu_custom_call.1} parent=1 // pred_check_branch
      %31 = sbr.rel (0) target = $region13
    $region12: #{tpu_custom_call.1} parent=1 // pred_region
      %32 = dma.done [#allocation3], 64
    $region13: #{tpu_custom_call.1} parent=1 // pred_fallthru
      _
    // Predicated region
    $region14: #{tpu_custom_call.1} parent=1 // pred_check
      _
    $region15: #{tpu_custom_call.1} parent=1 // pred_check_branch
      %34 = sbr.rel (0) target = $region17
    $region16: #{tpu_custom_call.1} parent=1 // pred_region
      %35 = dma.done [#allocation6], 64
    $region17: #{tpu_custom_call.1} parent=1 // pred_fallthru
      _
    %v36 = vld [vmem:[#allocation2] sm:$0xf]
    %v37 = vld [vmem:[#allocation5] sm:$0xf]
    %v38 = vmul.f32 %v36, %v37
    %v39 = vtanh.pop %v36
    %v40 = vadd.f32 %v39, %v38
    %v41 = vtanh.pop %v37
    %v42 = vadd.f32 %v41, %v38
    %43 = vst [vmem:[#allocation7] sm:$0xf] %v40
    %44 = vst [vmem:[#allocation7 + $0x4] sm:$0xf] %v42
    %45 = vst [vmem:[#allocation7 + $0x8] sm:$0xf] %v40
    %46 = vst [vmem:[#allocation7 + $0xc] sm:$0xf] %v42
    %47 = vst [vmem:[#allocation7 + $0x10] sm:$0xf] %v40
    %48 = vst [vmem:[#allocation7 + $0x14] sm:$0xf] %v42
    %49 = vst [vmem:[#allocation7 + $0x18] sm:$0xf] %v40
    %50 = vst [vmem:[#allocation7 + $0x1c] sm:$0xf] %v42
    %51 = vst [vmem:[#allocation7 + $0x20] sm:$0xf] %v40
    %52 = vst [vmem:[#allocation7 + $0x24] sm:$0xf] %v42
    // Predicated region
    $region18: #{tpu_custom_call.1} parent=1 // pred_check
      _
    $region19: #{tpu_custom_call.1} parent=1 // pred_check_branch
      %54 = sbr.rel (0) target = $region21
    $region20: #{tpu_custom_call.1} parent=1 // pred_region
      %s56 = ssub.s32 640, 640
      %57 = vsyncadd [#allocation4], %s56
      %s59 = sshll.u32 [#allocation7], 4
      %s60 = int_to_ptr.vmem [resolvable:$true] %s59
      %62 = dma.vmem_to_hbm [thread:$0]  %s60, 640, %s2, [#allocation4]
    $region21: #{tpu_custom_call.1} parent=1 // pred_fallthru
      _
    // Predicated region
    $region22: #{tpu_custom_call.1} parent=1 // pred_check
      _
    $region23: #{tpu_custom_call.1} parent=1 // pred_check_branch
      %64 = sbr.rel (0) target = $region25
    $region24: #{tpu_custom_call.1} parent=1 // pred_region
      %65 = dma.done [#allocation4], 640
    $region25: #{tpu_custom_call.1} parent=1 // pred_fallthru
      _
    %66 = vsyncpa [#allocation3], 1
    %67 = vsyncpa [#allocation6], 1
    %68 = vsyncpa [#allocation4], 1

</llo_original>
